<compile_context>
chip_gen: v5e
topology: v5e:2x2
jax: 0.10.0
libtpu: 0.0.40
codegen_flags: <defaults>
</compile_context>

<pallas_src>
import functools

import jax
import jax.numpy as jnp
from jax.experimental import pallas as pl
from jax.experimental.pallas import tpu as pltpu


def bert_pooler_kernel(x_ref, w_ref, b_ref, o_ref):
    # x_ref: [TB, H]  first-token activations for this batch tile (compute dtype)
    # w_ref: [H, H]   weight pre-transposed to [in, out] — VMEM-resident
    # b_ref: [1, H]   bias (f32) — VMEM-resident
    # o_ref: [TB, H]  pooled output tile (input dtype)
    y = jnp.dot(x_ref[...], w_ref[...], preferred_element_type=jnp.float32)
    y = y + b_ref[...]
    o_ref[...] = jnp.tanh(y).astype(o_ref.dtype)


def _round_up(x, m):
    return ((x + m - 1) // m) * m


def _resident_spec(block_shape, index_map):
    """BlockSpec for a block whose index_map is constant: fetched once, so
    single-buffer it (no double-buffer VMEM cost) when supported."""
    if hasattr(pl, "Buffered"):
        try:
            return pl.BlockSpec(block_shape, index_map, pipeline_mode=pl.Buffered(1))
        except TypeError:
            pass
    return pl.BlockSpec(block_shape, index_map)


def bert_pooler(hidden_states, weight, bias, *, block_b=None,
                compute_dtype=jnp.bfloat16):
    """hidden_states: [B, S, H]; weight: [H, H] (PyTorch [out, in]); bias: [H]."""
    B, S, H = hidden_states.shape
    out_dtype = hidden_states.dtype
    compute_dtype = jnp.dtype(compute_dtype)
    c_item = compute_dtype.itemsize
    pack = max(8, 32 // c_item)                 # sublane packing for compute dtype

    # ---- batch tile size (matmul M dimension) ------------------------------
    if block_b is None:
        block_b = 512 if c_item <= 2 else 256   # v5e-safe f32 default
    tb = min(block_b, B)
    # v7x megacore: guarantee >= 2 batch tiles when the batch is large enough
    # so the "parallel" grid axis actually shards across both TensorCores.
    if B >= 256:
        tb = min(tb, _round_up(pl.cdiv(B, 2), 256))
    if tb != B:
        # MXU / dtype-aware rounding of the tile height.
        if tb >= 256:
            tb = (tb // 256) * 256
        elif tb >= 128:
            tb = (tb // 128) * 128
        else:
            tb = (tb // pack) * pack
        if tb == 0:
            tb = B                              # batch too small to tile: single full-span block
    grid_b = pl.cdiv(B, tb)

    # ---- first-token gather (fused into the BlockSpec when lane-aligned) ---
    if H % 128 == 0:
        # View [B, S, H] as [B, S*H] (free): column-block 0 of width H is
        # exactly hidden_states[:, 0, :]; the BlockSpec DMA reads only those
        # rows straight out of HBM.
        x = hidden_states.reshape(B, S * H)
    else:
        # Unaligned toy H: block last dim must equal the array's last dim,
        # so slice in JAX instead (small [B, H] copy).
        x = hidden_states[:, 0, :]

    # ---- one-time wrapper-side prep: unified dtypes + pre-transposed W -----
    x = x.astype(compute_dtype)
    w_t = weight.T.astype(compute_dtype)        # [in, out]: kernel does a plain matmul
    b2d = bias.reshape(1, H).astype(jnp.float32)

    cost = pl.CostEstimate(
        flops=2 * B * H * H,
        transcendentals=B * H,
        bytes_accessed=(B * H + H * H) * c_item + H * 4
        + B * H * jnp.dtype(out_dtype).itemsize,
    )

    return pl.pallas_call(
        bert_pooler_kernel,
        out_shape=jax.ShapeDtypeStruct((B, H), out_dtype),
        grid_spec=pltpu.PrefetchScalarGridSpec(
            num_scalar_prefetch=0,
            grid=(grid_b,),
            in_specs=[
                pl.BlockSpec((tb, H), lambda i: (i, 0)),     # first-token rows, tile i
                _resident_spec((H, H), lambda i: (0, 0)),    # weight: resident, single-buffered
                _resident_spec((1, H), lambda i: (0, 0)),    # bias: resident, single-buffered
            ],
            out_specs=pl.BlockSpec((tb, H), lambda i: (i, 0)),
        ),
        compiler_params=pltpu.CompilerParams(
            dimension_semantics=("parallel",),               # shard batch tiles across TCs (v7x)
        ),
        cost_estimate=cost,
    )(x, w_t, b2d)


def bert_pooler_ref(hidden_states, weight, bias):
    first_token = hidden_states[:, 0, :]
    return jnp.tanh(first_token @ weight.T + bias)


if __name__ == "__main__":
    # ---- config 1: lane-aligned H, two batch tiles with a PARTIAL last tile,
    #                default bf16 MXU path (f32 accumulation) -------------------
    B, S, H = 20, 8, 128
    key = jax.random.PRNGKey(0)
    k_x, k_w, k_b = jax.random.split(key, 3)

    hidden_states = jax.random.normal(k_x, (B, S, H), dtype=jnp.float32)
    # Deterministic "Linear(H, H)" parameters (PyTorch layout: [out, in]).
    weight = jax.random.normal(k_w, (H, H), dtype=jnp.float32) * 0.02
    bias = jax.random.normal(k_b, (H,), dtype=jnp.float32) * 0.02

    ref = bert_pooler_ref(hidden_states, weight, bias)

    pooler_bf16 = jax.jit(functools.partial(bert_pooler, block_b=16))
    out_bf16 = jax.block_until_ready(pooler_bf16(hidden_states, weight, bias))
    assert out_bf16.shape == (B, H) and out_bf16.dtype == hidden_states.dtype
    assert jnp.allclose(out_bf16, ref, atol=2e-2, rtol=2e-2), "mismatch (bf16 MXU path)"

    # ---- config 2: same shapes, exact f32 compute path ------------------------
    pooler_f32 = jax.jit(
        functools.partial(bert_pooler, block_b=16, compute_dtype=jnp.float32))
    out_f32 = jax.block_until_ready(pooler_f32(hidden_states, weight, bias))
    assert jnp.allclose(out_f32, ref, atol=2e-5, rtol=2e-5), "mismatch (f32 path)"

    # ---- config 3: tiny unaligned H (fallback slice path) ---------------------
    B2, S2, H2 = 2, 8, 32
    k_x2, k_w2, k_b2 = jax.random.split(jax.random.PRNGKey(1), 3)
    hs2 = jax.random.normal(k_x2, (B2, S2, H2), dtype=jnp.float32)
    w2 = jax.random.normal(k_w2, (H2, H2), dtype=jnp.float32) * 0.02
    b2 = jax.random.normal(k_b2, (H2,), dtype=jnp.float32) * 0.02
    out2 = jax.block_until_ready(bert_pooler(hs2, w2, b2, compute_dtype=jnp.float32))
    ref2 = bert_pooler_ref(hs2, w2, b2)
    assert jnp.allclose(out2, ref2, atol=2e-5, rtol=2e-5), "mismatch (fallback path)"

    print("KERNEL_OK")
</pallas_src>

<mosaic_0001>
module attributes {stable_mosaic.version = 11 : i64} {
  func.func @bert_pooler_kernel(%arg0: i32, %arg1: memref<16x128xbf16, #tpu.memory_space<vmem>>, %arg2: memref<128x128xbf16, #tpu.memory_space<vmem>>, %arg3: memref<1x128xf32, #tpu.memory_space<vmem>>, %arg4: memref<16x128xf32, #tpu.memory_space<vmem>>) attributes {dimension_semantics = [#tpu.dimension_semantics<parallel>], iteration_bounds = array<i64: 2>, scalar_prefetch = 0 : i64, scratch_operands = 0 : i64, tpu.core_type = #tpu.core_type<tc>, window_params = [{transform_indices = @transform_0, window_bounds = array<i64: 16, 128>}, {pipeline_mode = #tpu.pipeline_mode<synchronous>, transform_indices = @transform_1, window_bounds = array<i64: 128, 128>}, {pipeline_mode = #tpu.pipeline_mode<synchronous>, transform_indices = @transform_2, window_bounds = array<i64: 1, 128>}, {transform_indices = @transform_3, window_bounds = array<i64: 16, 128>}]} {
    %c0 = arith.constant 0 : index
    %c0_0 = arith.constant 0 : index
    %0 = vector.load %arg1[%c0, %c0_0] : memref<16x128xbf16, #tpu.memory_space<vmem>>, vector<16x128xbf16>
    %c0_1 = arith.constant 0 : index
    %c0_2 = arith.constant 0 : index
    %1 = vector.load %arg2[%c0_1, %c0_2] : memref<128x128xbf16, #tpu.memory_space<vmem>>, vector<128x128xbf16>
    %cst = arith.constant dense<0.000000e+00> : vector<16x128xf32>
    %2 = tpu.matmul %0, %1, %cst {dimension_numbers = #tpu.dot_dimension_numbers<[1], [0], [0], [1], [0, 0, 1, 1], [], []>} : vector<16x128xbf16>, vector<128x128xbf16>, vector<16x128xf32> -> vector<16x128xf32>
    %c0_3 = arith.constant 0 : index
    %c0_4 = arith.constant 0 : index
    %3 = vector.load %arg3[%c0_3, %c0_4] : memref<1x128xf32, #tpu.memory_space<vmem>>, vector<1x128xf32>
    %4 = vector.broadcast %3 : vector<1x128xf32> to vector<16x128xf32>
    %5 = arith.addf %2, %4 : vector<16x128xf32>
    %6 = math.tanh %5 : vector<16x128xf32>
    %c0_5 = arith.constant 0 : index
    %c0_6 = arith.constant 0 : index
    %7 = vector.load %arg4[%c0_5, %c0_6] : memref<16x128xf32, #tpu.memory_space<vmem>>, vector<16x128xf32>
    tpu.vector_store %arg4[%c0_5, %c0_6], %6 {strides = array<i32>} : memref<16x128xf32, #tpu.memory_space<vmem>>, vector<16x128xf32>,
    return
  }
  func.func @transform_0(%arg0: i32) -> (i32, i32) {
    %c0_i32 = arith.constant 0 : i32
    %c0_i32_0 = arith.constant 0 : i32
    return %arg0, %c0_i32 : i32, i32
  }
  func.func @transform_1(%arg0: i32) -> (i32, i32) {
    %c0_i32 = arith.constant 0 : i32
    %c0_i32_0 = arith.constant 0 : i32
    %c0_i32_1 = arith.constant 0 : i32
    return %c0_i32, %c0_i32_0 : i32, i32
  }
  func.func @transform_2(%arg0: i32) -> (i32, i32) {
    %c0_i32 = arith.constant 0 : i32
    %c0_i32_0 = arith.constant 0 : i32
    %c0_i32_1 = arith.constant 0 : i32
    return %c0_i32, %c0_i32_0 : i32, i32
  }
  func.func @transform_3(%arg0: i32) -> (i32, i32) {
    %c0_i32 = arith.constant 0 : i32
    %c0_i32_0 = arith.constant 0 : i32
    return %arg0, %c0_i32 : i32, i32
  }
}

</mosaic_0001>

<llo_original>
// kernel: bert_pooler.1
$region0: #{bert_pooler.1}
  #allocation0 [shape = 'u32[]', space=smem, size = 0x4, offset = 0x4, fixed_abs, tag = 'smem constant byte address 0x4 - core index']
  #allocation1 [shape = 'u32[72,128]{1,0:T(1,128)}', space=vmem, size = 0x9000, scoped, tag = 'internal scratch']
  %s0 = inlined_call_operand.vmem [shape: bf16[20,1024], index: 0, kind: input, shape index: {}]
  %s1 = inlined_call_operand.vmem [shape: bf16[128,128], index: 1, kind: input, shape index: {}]
  %s2 = inlined_call_operand.vmem [shape: f32[1,128], index: 2, kind: input, shape index: {}]
  %s3 = inlined_call_operand.hbm [shape: f32[20,128], index: 3, kind: output, shape index: {}]
  %s4 = sld [smem:[#allocation0]]
  $region93: #{bert_pooler.1} parent=0
    _
  %s6 = ssub.s32 1, %s4
  %s7 = scalar_select 0, %s6, %s4
  $region1: #{bert_pooler.1} parent=0
    #allocation2 [shape = 'u8[8192]{0}', space=vmem, size = 0x2000, scoped, tag = 'input window, operand 0']
    #allocation3 [shape = 'u8[16384]{0}', space=vmem, size = 0x4000, scoped, tag = 'output window, operand 0']
    #allocation4 [shape = 's32[2]{0}', space=sflag, size = 0x8, scoped, tag = 'scoped memory for bert_pooler.1']
    %8 = vsyncpa [#allocation4], 0
    %s9 = scalar_lea.sflag [#allocation4], 1
    %10 = vsyncpa %s9, 0
    loop: start=0, step=1, limit=4
    $region2: #{bert_pooler.1} parent=1 // loop_pre_header
      _
    $region3: #{bert_pooler.1} parent=1 // loop_header
      %s12 = sphi 0, %s16
      %p13 = scmp.ge.s32.totalorder %s12, 4
      %s22 = sphi 0, %s24
      %s25 = sphi 0, %s22
      %s26 = sphi 0, %s25
      %s42 = sphi 0, %s26
      %s46 = sphi 0, %s46
      %s48 = sphi 0, %s46
      %s49 = sphi 0, %s48
      %s63 = sphi 0, %s49
      %s67 = sphi 0, %s67
      %s69 = sphi 0, %s67
      %s70 = sphi 0, %s69
      %s84 = sphi 0, %s70
      %s90 = sphi 0, %s92
      %s93 = sphi 0, %s90
      %s94 = sphi 0, %s93
      %s110 = sphi 0, %s94
    $region4: #{bert_pooler.1} parent=1 // loop_header_branch
      %15 = sbr.rel (%p13) target = $region8
    $region5: #{bert_pooler.1} parent=1 // loop_body
      %s17 = ssub.s32 %s12, 1
      %s18 = ssub.s32 %s12, 2
      %s19 = sadd.s32 %s12, 1
      %s20 = ssub.s32 %s12, %s19
      %p21 = scmp.eq.s32.totalorder %s20, 0
      %s23 = sadd.s32 %s22, 1
      %s24 = scalar_select %p21, %s22, %s23
      %p27 = pneg %p21
      %p28 = scmp.eq.s32.totalorder %s12, 1
      %p29 = por %p27, %p28
      %p30 = scmp.ne.s32.totalorder %s22, %s25
      %p31 = scmp.eq.s32.totalorder %s12, 0
      %p32 = por %p30, %p31
      %p33 = scmp.ne.s32.totalorder %s22, %s25
      %p34 = scmp.eq.s32.totalorder %s17, 1
      %p35 = por %p33, %p34
      %p36 = scmp.ne.s32.totalorder %s25, %s26
      %p37 = scmp.eq.s32.totalorder %s17, 0
      %p38 = por %p36, %p37
      %p39 = scmp.ne.s32.totalorder %s25, %s26
      %p40 = scmp.eq.s32.totalorder %s18, 1
      %p41 = por %p39, %p40
      %p43 = scmp.ne.s32.totalorder %s26, %s42
      %p44 = scmp.eq.s32.totalorder %s18, 0
      %p45 = por %p43, %p44
      %s47 = sadd.s32 %s46, 1
      %p50 = scmp.eq.s32.totalorder %s12, 1
      %p51 = scmp.ne.s32.totalorder %s46, %s48
      %p52 = scmp.eq.s32.totalorder %s12, 0
      %p53 = por %p51, %p52
      %p54 = scmp.ne.s32.totalorder %s46, %s48
      %p55 = scmp.eq.s32.totalorder %s17, 1
      %p56 = por %p54, %p55
      %p57 = scmp.ne.s32.totalorder %s48, %s49
      %p58 = scmp.eq.s32.totalorder %s17, 0
      %p59 = por %p57, %p58
      %p60 = scmp.ne.s32.totalorder %s48, %s49
      %p61 = scmp.eq.s32.totalorder %s18, 1
      %p62 = por %p60, %p61
      %p64 = scmp.ne.s32.totalorder %s49, %s63
      %p65 = scmp.eq.s32.totalorder %s18, 0
      %p66 = por %p64, %p65
      %s68 = sadd.s32 %s67, 1
      %p71 = scmp.eq.s32.totalorder %s12, 1
      %p72 = scmp.ne.s32.totalorder %s67, %s69
      %p73 = scmp.eq.s32.totalorder %s12, 0
      %p74 = por %p72, %p73
      %p75 = scmp.ne.s32.totalorder %s67, %s69
      %p76 = scmp.eq.s32.totalorder %s17, 1
      %p77 = por %p75, %p76
      %p78 = scmp.ne.s32.totalorder %s69, %s70
      %p79 = scmp.eq.s32.totalorder %s17, 0
      %p80 = por %p78, %p79
      %p81 = scmp.ne.s32.totalorder %s69, %s70
      %p82 = scmp.eq.s32.totalorder %s18, 1
      %p83 = por %p81, %p82
      %p85 = scmp.ne.s32.totalorder %s70, %s84
      %p86 = scmp.eq.s32.totalorder %s18, 0
      %p87 = por %p85, %p86
      %s88 = ssub.s32 %s12, %s19
      %p89 = scmp.eq.s32.totalorder %s88, 0
      %s91 = sadd.s32 %s90, 1
      %s92 = scalar_select %p89, %s90, %s91
      %p95 = pneg %p89
      %p96 = scmp.eq.s32.totalorder %s12, 1
      %p97 = por %p95, %p96
      %p98 = scmp.ne.s32.totalorder %s90, %s93
      %p99 = scmp.eq.s32.totalorder %s12, 0
      %p100 = por %p98, %p99
      %p101 = scmp.ne.s32.totalorder %s90, %s93
      %p102 = scmp.eq.s32.totalorder %s17, 1
      %p103 = por %p101, %p102
      %p104 = scmp.ne.s32.totalorder %s93, %s94
      %p105 = scmp.eq.s32.totalorder %s17, 0
      %p106 = por %p104, %p105
      %p107 = scmp.ne.s32.totalorder %s93, %s94
      %p108 = scmp.eq.s32.totalorder %s18, 1
      %p109 = por %p107, %p108
      %p111 = scmp.ne.s32.totalorder %s94, %s110
      %p112 = scmp.eq.s32.totalorder %s18, 0
      %p113 = por %p111, %p112
      %p114 = scmp.le.s32.totalorder 1, %s12
      %p115 = scmp.lt.s32.totalorder %s12, 3
      %p116 = pnand %p114, %p115
      %p117 = pneg %p116
      // Predicated region
      $region9: #{bert_pooler.1} parent=5 // pred_check
        _
      $region10: #{bert_pooler.1} parent=5 // pred_check_branch
        %119 = sbr.rel (%p116) target = $region12
      $region11: #{bert_pooler.1} parent=5 // pred_region
        %s120 = ssub.s32 %s12, 1
        // Predicated region
        $region13: #{bert_pooler.1} parent=11 // pred_check
          %p121 = pneg %p59
        $region14: #{bert_pooler.1} parent=11 // pred_check_branch
          %123 = sbr.rel (%p121) target = $region16
        $region15: #{bert_pooler.1} parent=11 // pred_region
          _
        $region16: #{bert_pooler.1} parent=11 // pred_fallthru
          _
        // Predicated region
        $region17: #{bert_pooler.1} parent=11 // pred_check
          %p124 = pneg %p80
        $region18: #{bert_pooler.1} parent=11 // pred_check_branch
          %126 = sbr.rel (%p124) target = $region20
        $region19: #{bert_pooler.1} parent=11 // pred_region
          _
        $region20: #{bert_pooler.1} parent=11 // pred_fallthru
          _
      $region12: #{bert_pooler.1} parent=5 // pred_fallthru
        _
      %p127 = scmp.lt.s32.totalorder %s12, 2
      // Predicated region
      $region21: #{bert_pooler.1} parent=5 // pred_check
        %p128 = pneg %p127
      $region22: #{bert_pooler.1} parent=5 // pred_check_branch
        %130 = sbr.rel (%p128) target = $region24
      $region23: #{bert_pooler.1} parent=5 // pred_region
        // Predicated region
        $region25: #{bert_pooler.1} parent=23 // pred_check
          %p131 = pneg %p32
        $region26: #{bert_pooler.1} parent=23 // pred_check_branch
          %133 = sbr.rel (%p131) target = $region28
        $region27: #{bert_pooler.1} parent=23 // pred_region
          %s134 = sand.u32 %s22, 1
          %s135 = sand.u32 %s22, 1
          %s136 = smul.addr %s135, 8
          %s137 = scalar_lea.vmem [#allocation2], %s136
          %s138 = smul.u32 2, %s12
          %s139 = ssub.s32 3, %s138
          %p140 = scmp.lt.s32.totalorder %s139, 2
          %s141 = scalar_select %p140, %s139, 2
          %s142 = smul.u32 4, %s141
          %p143 = scmp.ne.s32.totalorder 0, %s142
          %s144 = smul.addr %s138, 8
          %s145 = smul.addr %s144, 4
          %s146 = scalar_lea.vmem %s0, %s145
          // Predicated region
          $region29: #{bert_pooler.1} parent=27 // pred_check
            %p147 = pneg %p143
          $region30: #{bert_pooler.1} parent=27 // pred_check_branch
            %149 = sbr.rel (%p147) target = $region32
          $region31: #{bert_pooler.1} parent=27 // pred_region
            // Predicated region
            $region33: #{bert_pooler.1} parent=31 // pred_check
              _
            $region34: #{bert_pooler.1} parent=31 // pred_check_branch
              %151 = sbr.rel target = $region36
            $region35: #{bert_pooler.1} parent=31 // pred_region
              // Predicated region
              $region55: #{bert_pooler.1} parent=35 // pred_check
                _
              $region56: #{bert_pooler.1} parent=35 // pred_check_branch
                %203 = sbr.rel (0) target = $region58
              $region57: #{bert_pooler.1} parent=35 // pred_region
                %s205 = ssub.s32 16, 1
                %s206 = sshrl.u32 %s141, 1
                // While loop
                $region59: #{bert_pooler.1} parent=57 // loop_pre_header
                  _
                $region60: #{bert_pooler.1} parent=57 // loop_header
                  %s208 = sphi 0, %s210
                  %p209 = scmp.ge.s32.totalorder %s208, %s206
                  %s213 = sphi 0, %s222
                  %s214 = sphi %s146, %s225
                  %s215 = sphi %s137, %s226
                $region61: #{bert_pooler.1} parent=57 // loop_header_branch
                  %212 = sbr.rel (%p209) target = $region65
                $region62: #{bert_pooler.1} parent=57 // loop_body
                  %v216 = vld [vmem:[%s214] sm:%s205]
                  %217 = vst [vmem:[%s215] sm:%s205] %v216
                  %v218 = vld [vmem:[%s214 + $0x20] sm:%s205]
                  %219 = vst [vmem:[%s215 + $0x4] sm:%s205] %v218
                  %s220 = sadd.s32 1, %s213
                  %p221 = scmp.ge.s32.totalorder %s220, %s206
                  %s222 = scalar_select %p221, 0, %s220
                  %s223 = smul.u32 %s222, 64
                  %s224 = smul.u32 %s222, 8
                  %s225 = scalar_lea.vmem %s146, %s223
                  %s226 = scalar_lea.vmem %s137, %s224 [#allocation2]
                $region63: #{bert_pooler.1} parent=57 // loop_footer
                  %s210 = sadd.s32 %s208, 1
                $region64: #{bert_pooler.1} parent=57 // loop_footer_branch
                  %207 = sbr.rel target = $region60
                $region65: #{bert_pooler.1} parent=57 // loop_exit
                  _
                %s227 = sshrl.u32 %s141, 1
                %s228 = sand.u32 %s141, 1
                %s229 = smul.u32 %s227, 2
                %s230 = smul.u32 32, %s229
                %s231 = scalar_lea.vmem %s146, %s230
                %s232 = smul.u32 4, %s229
                %s233 = scalar_lea.vmem %s137, %s232 [#allocation2]
                // While loop
                $region66: #{bert_pooler.1} parent=57 // loop_pre_header
                  _
                $region67: #{bert_pooler.1} parent=57 // loop_header
                  %s235 = sphi 0, %s237
                  %p236 = scmp.ge.s32.totalorder %s235, %s228
                  %s240 = sphi 0, %s247
                  %s241 = sphi %s231, %s250
                  %s242 = sphi %s233, %s251
                $region68: #{bert_pooler.1} parent=57 // loop_header_branch
                  %239 = sbr.rel (%p236) target = $region72
                $region69: #{bert_pooler.1} parent=57 // loop_body
                  %v243 = vld [vmem:[%s241] sm:%s205]
                  %244 = vst [vmem:[%s242] sm:%s205] %v243
                  %s245 = sadd.s32 1, %s240
                  %p246 = scmp.ge.s32.totalorder %s245, %s228
                  %s247 = scalar_select %p246, 0, %s245
                  %s248 = smul.u32 %s247, 32
                  %s249 = smul.u32 %s247, 4
                  %s250 = scalar_lea.vmem %s231, %s248
                  %s251 = scalar_lea.vmem %s233, %s249 [#allocation2]
                $region70: #{bert_pooler.1} parent=57 // loop_footer
                  %s237 = sadd.s32 %s235, 1
                $region71: #{bert_pooler.1} parent=57 // loop_footer_branch
                  %234 = sbr.rel target = $region67
                $region72: #{bert_pooler.1} parent=57 // loop_exit
                  _
              $region58: #{bert_pooler.1} parent=35 // pred_fallthru
                _
            $region36: #{bert_pooler.1} parent=31 // pred_fallthru
              _
            // Predicated region
            $region37: #{bert_pooler.1} parent=31 // pred_check
              _
            $region38: #{bert_pooler.1} parent=31 // pred_check_branch
              %153 = sbr.rel (0) target = $region40
            $region39: #{bert_pooler.1} parent=31 // pred_region
              %s155 = ssub.s32 16, 1
              %s156 = sshrl.u32 %s141, 1
              // While loop
              $region41: #{bert_pooler.1} parent=39 // loop_pre_header
                _
              $region42: #{bert_pooler.1} parent=39 // loop_header
                %s158 = sphi 0, %s160
                %p159 = scmp.ge.s32.totalorder %s158, %s156
                %s163 = sphi 0, %s172
                %s164 = sphi %s146, %s175
                %s165 = sphi %s137, %s176
              $region43: #{bert_pooler.1} parent=39 // loop_header_branch
                %162 = sbr.rel (%p159) target = $region47
              $region44: #{bert_pooler.1} parent=39 // loop_body
                %v166 = vld [vmem:[%s164] sm:%s155]
                %167 = vst [vmem:[%s165] sm:%s155] %v166
                %v168 = vld [vmem:[%s164 + $0x20] sm:%s155]
                %169 = vst [vmem:[%s165 + $0x4] sm:%s155] %v168
                %s170 = sadd.s32 1, %s163
                %p171 = scmp.ge.s32.totalorder %s170, %s156
                %s172 = scalar_select %p171, 0, %s170
                %s173 = smul.u32 %s172, 64
                %s174 = smul.u32 %s172, 8
                %s175 = scalar_lea.vmem %s146, %s173
                %s176 = scalar_lea.vmem %s137, %s174 [#allocation2]
              $region45: #{bert_pooler.1} parent=39 // loop_footer
                %s160 = sadd.s32 %s158, 1
              $region46: #{bert_pooler.1} parent=39 // loop_footer_branch
                %157 = sbr.rel target = $region42
              $region47: #{bert_pooler.1} parent=39 // loop_exit
                _
              %s177 = sshrl.u32 %s141, 1
              %s178 = sand.u32 %s141, 1
              %s179 = smul.u32 %s177, 2
              %s180 = smul.u32 32, %s179
              %s181 = scalar_lea.vmem %s146, %s180
              %s182 = smul.u32 4, %s179
              %s183 = scalar_lea.vmem %s137, %s182 [#allocation2]
              // While loop
              $region48: #{bert_pooler.1} parent=39 // loop_pre_header
                _
              $region49: #{bert_pooler.1} parent=39 // loop_header
                %s185 = sphi 0, %s187
                %p186 = scmp.ge.s32.totalorder %s185, %s178
                %s190 = sphi 0, %s197
                %s191 = sphi %s181, %s200
                %s192 = sphi %s183, %s201
              $region50: #{bert_pooler.1} parent=39 // loop_header_branch
                %189 = sbr.rel (%p186) target = $region54
              $region51: #{bert_pooler.1} parent=39 // loop_body
                %v193 = vld [vmem:[%s191] sm:%s155]
                %194 = vst [vmem:[%s192] sm:%s155] %v193
                %s195 = sadd.s32 1, %s190
                %p196 = scmp.ge.s32.totalorder %s195, %s178
                %s197 = scalar_select %p196, 0, %s195
                %s198 = smul.u32 %s197, 32
                %s199 = smul.u32 %s197, 4
                %s200 = scalar_lea.vmem %s181, %s198
                %s201 = scalar_lea.vmem %s183, %s199 [#allocation2]
              $region52: #{bert_pooler.1} parent=39 // loop_footer
                %s187 = sadd.s32 %s185, 1
              $region53: #{bert_pooler.1} parent=39 // loop_footer_branch
                %184 = sbr.rel target = $region49
              $region54: #{bert_pooler.1} parent=39 // loop_exit
                _
            $region40: #{bert_pooler.1} parent=31 // pred_fallthru
              _
          $region32: #{bert_pooler.1} parent=27 // pred_fallthru
            _
          %252 = vnop
        $region28: #{bert_pooler.1} parent=23 // pred_fallthru
          _
      $region24: #{bert_pooler.1} parent=5 // pred_fallthru
        _
      %p253 = scmp.le.s32.totalorder 1, %s12
      %p254 = scmp.lt.s32.totalorder %s12, 3
      %p255 = pnand %p253, %p254
      %p256 = pneg %p255
      // Predicated region
      $region73: #{bert_pooler.1} parent=5 // pred_check
        _
      $region74: #{bert_pooler.1} parent=5 // pred_check_branch
        %258 = sbr.rel (%p255) target = $region76
      $region75: #{bert_pooler.1} parent=5 // pred_region
        %s259 = ssub.s32 %s12, 1
        %s260 = sand.u32 %s25, 1
        %s261 = sand.u32 %s25, 1
        %s262 = smul.addr %s261, 8
        %s263 = scalar_lea.vmem [#allocation2], %s262
        // Predicated region
        $region77: #{bert_pooler.1} parent=75 // pred_check
          %p264 = pneg %p38
        $region78: #{bert_pooler.1} parent=75 // pred_check_branch
          %266 = sbr.rel (%p264) target = $region80
        $region79: #{bert_pooler.1} parent=75 // pred_region
          _
        $region80: #{bert_pooler.1} parent=75 // pred_fallthru
          _
        %s267 = sand.u32 %s25, 1
        %s268 = sand.u32 %s25, 1
        %s269 = smul.addr %s268, 8
        %s270 = scalar_lea.vmem [#allocation2], %s269
        %p271 = pneg %p38
        %p272 = pneg %p35
        %p273 = pneg %p59
        %p274 = pneg %p56
        %p275 = pneg %p80
        %p276 = pneg %p77
        %p277 = pneg %p106
        %p278 = pneg %p103
        %s279 = sand.u32 %s93, 1
        %s280 = scalar_lea.sflag [#allocation4], %s279
        %s281 = sand.u32 %s93, 1
        %s282 = smul.addr %s281, 16
        %s283 = scalar_lea.vmem [#allocation3], %s282
        %s284 = smul.u32 2, %s17
        %s285 = ssub.s32 3, %s284
        %p286 = scmp.lt.s32.totalorder %s285, 2
        %s287 = scalar_select %p286, %s285, 2
        %s288 = smul.u32 4, %s287
        %s289 = smul.u32 2, %s17
        %s290 = ssub.s32 3, %s289
        %p291 = scmp.lt.s32.totalorder %s290, 2
        %s292 = scalar_select %p291, %s290, 2
        %s293 = smul.u32 8, %s292
        %v294 = vld [vmem:[%s263] sm:$0xf]
        %v295 = vld [vmem:[%s263 + $0x4] sm:$0xf]
        %v296 = vld [vmem:[%s1] sm:$0xf]
        %v297 = vld [vmem:[%s1 + $0x4] sm:$0xf]
        %v298 = vld [vmem:[%s1 + $0x8] sm:$0xf]
        %v299 = vld [vmem:[%s1 + $0xc] sm:$0xf]
        %v300 = vld [vmem:[%s1 + $0x10] sm:$0xf]
        %v301 = vld [vmem:[%s1 + $0x14] sm:$0xf]
        %v302 = vld [vmem:[%s1 + $0x18] sm:$0xf]
        %v303 = vld [vmem:[%s1 + $0x1c] sm:$0xf]
        %v304 = vld [vmem:[%s1 + $0x20] sm:$0xf]
        %v305 = vld [vmem:[%s1 + $0x24] sm:$0xf]
        %v306 = vld [vmem:[%s1 + $0x28] sm:$0xf]
        %v307 = vld [vmem:[%s1 + $0x2c] sm:$0xf]
        %v308 = vld [vmem:[%s1 + $0x30] sm:$0xf]
        %v309 = vld [vmem:[%s1 + $0x34] sm:$0xf]
        %v310 = vld [vmem:[%s1 + $0x38] sm:$0xf]
        %v311 = vld [vmem:[%s1 + $0x3c] sm:$0xf]
        %v312 = vld [vmem:[%s2] sm:$0x1]
        %v314 = vperm.slane %v312, 0
        %v318 = vunpack.c.l.b16 %v294
        %v319 = vunpack.c.l.b16 %v295
        %v320 = vpack.c.b16 %v319, %v318
        %v338 = vunpack.c.l.b16 %v296
        %v339 = vunpack.c.l.b16 %v297
        %v340 = vunpack.c.l.b16 %v298
        %v341 = vunpack.c.l.b16 %v299
        %v342 = vunpack.c.l.b16 %v300
        %v343 = vunpack.c.l.b16 %v301
        %v344 = vunpack.c.l.b16 %v302
        %v345 = vunpack.c.l.b16 %v303
        %v346 = vunpack.c.l.b16 %v304
        %v347 = vunpack.c.l.b16 %v305
        %v348 = vunpack.c.l.b16 %v306
        %v349 = vunpack.c.l.b16 %v307
        %v350 = vunpack.c.l.b16 %v308
        %v351 = vunpack.c.l.b16 %v309
        %v352 = vunpack.c.l.b16 %v310
        %v353 = vunpack.c.l.b16 %v311
        %v354 = vpack.c.b16 %v339, %v338
        %v355 = vpack.c.b16 %v341, %v340
        %v356 = vpack.c.b16 %v343, %v342
        %v357 = vpack.c.b16 %v345, %v344
        %v358 = vpack.c.b16 %v347, %v346
        %v359 = vpack.c.b16 %v349, %v348
        %v360 = vpack.c.b16 %v351, %v350
        %v361 = vpack.c.b16 %v353, %v352
        %370 = vmatpush.bf16.msra.mxu0 %v361
        %371 = vmatpush.bf16.msra.mxu0 %v360
        %372 = vmatpush.bf16.msra.mxu0 %v359
        %373 = vmatpush.bf16.msra.mxu0 %v358
        %374 = vmatpush.bf16.msra.mxu0 %v357
        %375 = vmatpush.bf16.msra.mxu0 %v356
        %376 = vmatpush.bf16.msra.mxu0 %v355
        %377 = vmatpush.bf16.msra.mxu0 %v354
        %378 = vmatmul.bf16.gmra.mxu0 %v320
        %v379 = vpop.f32.mrf.mxu0
        %v380 = vadd.f32 %v314, %v379
        %v381 = vpop.f32.mrf.mxu0
        %v382 = vadd.f32 %v314, %v381
        %383 = vdwg.mxu0
        %v384 = vtanh.pop %v380
        %v385 = vtanh.pop %v382
        %386 = vst [vmem:[%s283] sm:$0xff] %v384
        %387 = vst [vmem:[%s283 + $0x8] sm:$0xff] %v385
        %s388 = sand.u32 %s93, 1
        %s389 = scalar_lea.sflag [#allocation4], %s388
        %s390 = sand.u32 %s93, 1
        %s391 = smul.addr %s390, 16
        %s392 = scalar_lea.vmem [#allocation3], %s391
        // Predicated region
        $region81: #{bert_pooler.1} parent=75 // pred_check
          %p393 = pneg %p103
        $region82: #{bert_pooler.1} parent=75 // pred_check_branch
          %395 = sbr.rel (%p393) target = $region84
        $region83: #{bert_pooler.1} parent=75 // pred_region
          %s396 = smul.u32 2, %s17
          %s397 = ssub.s32 3, %s396
          %p398 = scmp.lt.s32.totalorder %s397, 2
          %s399 = scalar_select %p398, %s397, 2
          %s400 = smul.u32 8, %s399
          %s401 = ssub.s32 16, %s400
          %s402 = sshll.u32 %s401, 4
          %403 = vsyncadd %s389, %s402
          %p404 = scmp.ne.s32.totalorder 0, %s400
          %s405 = smul.addr %s396, 8
          %s406 = scalar_lea.hbm %s3, %s405
          %s407 = smul.u32 8, %s399
          %s408 = sshll.u32 %s392, 4
          %s409 = int_to_ptr.vmem [resolvable:$true] %s408
          %s410 = sshll.u32 %s406, 4
          %s411 = int_to_ptr.hbm [resolvable:$true] %s410
          %s412 = sshll.u32 %s407, 4
          %416 = dma.vmem_to_hbm [thread:$0]  (%p404), %s409, %s412, %s411, %s389, 128, 128, 8
        $region84: #{bert_pooler.1} parent=75 // pred_fallthru
          _
      $region76: #{bert_pooler.1} parent=5 // pred_fallthru
        _
      %p417 = scmp.le.s32.totalorder 2, %s12
      // Predicated region
      $region85: #{bert_pooler.1} parent=5 // pred_check
        %p418 = pneg %p417
      $region86: #{bert_pooler.1} parent=5 // pred_check_branch
        %420 = sbr.rel (%p418) target = $region88
      $region87: #{bert_pooler.1} parent=5 // pred_region
        %s421 = ssub.s32 %s12, 2
        // Predicated region
        $region89: #{bert_pooler.1} parent=87 // pred_check
          %p422 = pneg %p109
        $region90: #{bert_pooler.1} parent=87 // pred_check_branch
          %424 = sbr.rel (%p422) target = $region92
        $region91: #{bert_pooler.1} parent=87 // pred_region
          %s425 = sand.u32 %s94, 1
          %s426 = scalar_lea.sflag [#allocation4], %s425
          %s427 = sand.u32 %s94, 1
          %s428 = smul.addr %s427, 16
          %s429 = scalar_lea.vmem [#allocation3], %s428
          %431 = dma.done %s426, 256
        $region92: #{bert_pooler.1} parent=87 // pred_fallthru
          _
      $region88: #{bert_pooler.1} parent=5 // pred_fallthru
        _
    $region6: #{bert_pooler.1} parent=1 // loop_footer
      %s16 = sadd.s32 1, %s12
    $region7: #{bert_pooler.1} parent=1 // loop_footer_branch
      %11 = sbr.rel target = $region3
    $region8: #{bert_pooler.1} parent=1 // loop_exit
      _
    %432 = vsyncpa [#allocation4], 1
    %s433 = scalar_lea.sflag [#allocation4], 1
    %434 = vsyncpa %s433, 1

</llo_original>
